<compile_context>
chip_gen: v5e
topology: v5e:2x2
jax: 0.10.0
libtpu: 0.0.40
codegen_flags: <defaults>
</compile_context>

<pallas_src>
import numpy as np
import jax
import jax.numpy as jnp
from jax.experimental import pallas as pl
from jax.experimental.pallas import tpu as pltpu


def _round_up(v, m):
    return (v + m - 1) // m * m


# ----------------------------------------------------------------------------
# Wrapper-side layout plumbing (pure XLA reshapes, kept out of the kernel)
# ----------------------------------------------------------------------------
def _im2col_T(x, kh, kw, stride, pad, k_pad):
    """NCHW -> transposed im2col patches (K_pad, N, Ho*Wo).

    K rows are ordered (C_in, kh, kw) to match torch's
    weight.reshape(C_out, C_in*kh*kw).  The first zero-pad row (absolute row
    C_in*kh*kw) is set to 1.0 so the conv bias folds into the weight matmul.
    """
    n, c, h, w = x.shape
    xp = jnp.pad(x, ((0, 0), (0, 0), (pad, pad), (pad, pad)))
    ho = (h + 2 * pad - kh) // stride + 1
    wo = (w + 2 * pad - kw) // stride + 1
    cols = []
    for i in range(kh):
        for j in range(kw):
            cols.append(xp[:, :, i:i + stride * ho:stride, j:j + stride * wo:stride])
    patches = jnp.stack(cols, axis=2)                      # (N, C, kh*kw, Ho, Wo)
    patches = patches.reshape(n, c * kh * kw, ho * wo)     # (N, K, Ho*Wo)
    patches = patches.transpose(1, 0, 2)                   # (K, N, Ho*Wo)
    k = c * kh * kw
    pad_rows = jnp.zeros((k_pad - k, n, ho * wo), patches.dtype)
    pad_rows = pad_rows.at[0].set(1.0)                     # ones row -> bias term
    patches = jnp.concatenate([patches, pad_rows], axis=0)  # (Kp, N, Ho*Wo)
    return patches, ho, wo


def _augment_weight(w, b, k_pad):
    """(C_out, C_in, kh, kw) + (C_out,) -> (C_out, K_pad) with bias in col K."""
    c_out = w.shape[0]
    k = int(np.prod(w.shape[1:]))
    wm = w.reshape(c_out, k)
    extra = jnp.zeros((c_out, k_pad - k), wm.dtype)
    extra = extra.at[:, 0].set(b)                          # lines up with ones row
    return jnp.concatenate([wm, extra], axis=1)


def _bilinear_matrix(out_size, in_size):
    """(out_size, in_size) matrix reproducing F.interpolate(mode='bilinear',
    align_corners=False) along one axis.  Reduces to identity when the sizes
    match (mirrors the module's conditional interpolate)."""
    o = np.arange(out_size, dtype=np.float64)
    src = (o + 0.5) * (in_size / out_size) - 0.5
    src = np.clip(src, 0.0, None)
    i0 = np.minimum(np.floor(src).astype(np.int64), in_size - 1)
    i1 = np.minimum(i0 + 1, in_size - 1)
    w1 = src - i0
    w0 = 1.0 - w1
    m = np.zeros((out_size, in_size), dtype=np.float64)
    m[np.arange(out_size), i0] += w0
    m[np.arange(out_size), i1] += w1
    return m


# ----------------------------------------------------------------------------
# Fused kernel: conv1 + conv2 (im2col matmuls, bias fused) + bilinear + concat
# ----------------------------------------------------------------------------
def _make_fused_kernel(c1, n_batch, hw1):
    def kernel(p1t_ref, p2t_ref, w1_ref, w2_ref, wkt_ref, out_ref):
        # trimmed_model1: conv (+ fused bias) + ReLU, computed transposed so
        # the lane dim is M1 = N*H*W (lane-dense, 128-multiple), not C_out.
        f1 = jnp.dot(w1_ref[...], p1t_ref[...], preferred_element_type=jnp.float32)
        out_ref[0:c1, :] = jnp.maximum(f1, 0.0).astype(out_ref.dtype)   # rows [0, C1)

        # trimmed_model2, per batch element (N is tiny & static):
        #   conv (+ fused bias) + ReLU -> (C2, h*w), then the separable
        #   bilinear resize as ONE matmul against kron(wh, ww)^T -> (C2, H*W).
        for i in range(n_batch):
            f2 = jnp.dot(w2_ref[...], p2t_ref[i], preferred_element_type=jnp.float32)
            f2 = jnp.maximum(f2, 0.0)                                   # (C2, h*w)
            up = jnp.dot(f2, wkt_ref[...], preferred_element_type=jnp.float32)
            out_ref[c1:, i * hw1:(i + 1) * hw1] = up.astype(out_ref.dtype)
    return kernel


@jax.jit
def feature_ensemble_2models(x, params):
    n, c_in, _, _ = x.shape
    c1, _, kh, kw = params["w1"].shape
    c2 = params["w2"].shape[0]
    kdim = c_in * kh * kw
    kp = _round_up(kdim + 1, 8)               # pad K=36 -> 40; +1 row carries bias

    # im2col (transposed) + flattened/augmented weights: wrapper-side layout only.
    p1t, ho1, wo1 = _im2col_T(x, kh, kw, stride=1, pad=1, k_pad=kp)  # (Kp, N, H*W)
    p2t, ho2, wo2 = _im2col_T(x, kh, kw, stride=2, pad=1, k_pad=kp)  # (Kp, N, h*w)
    hw1, hw2 = ho1 * wo1, ho2 * wo2
    m1 = n * hw1
    p1t = p1t.reshape(kp, m1)                 # (Kp, N*H*W)  lane-dense rhs
    p2t = p2t.transpose(1, 0, 2)              # (N, Kp, h*w) per-batch rhs slices
    w1a = _augment_weight(params["w1"], params["b1"], kp)            # (C1, Kp)
    w2a = _augment_weight(params["w2"], params["b2"], kp)            # (C2, Kp)

    # Precomputed separable bilinear matrix kron(wh, ww)^T (identity if the
    # spatial sizes already match).  Only (h*w, H*W) — no O(N^2) block-diag.
    wh = _bilinear_matrix(ho1, ho2)
    ww = _bilinear_matrix(wo1, wo2)
    wkt = jnp.asarray(np.kron(wh, ww).T, jnp.float32)                # (h*w, H*W)

    flops = 2 * c1 * kp * m1 + n * (2 * c2 * kp * hw2 + 2 * c2 * hw2 * hw1)
    inputs = (p1t, p2t, w1a, w2a, wkt)
    bytes_accessed = sum(int(np.prod(a.shape)) * 4 for a in inputs) + (c1 + c2) * m1 * 4

    out_flat = pl.pallas_call(
        _make_fused_kernel(c1, n, hw1),
        out_shape=jax.ShapeDtypeStruct((c1 + c2, m1), jnp.float32),
        in_specs=[pl.BlockSpec(memory_space=pltpu.MemorySpace.VMEM)] * len(inputs),
        out_specs=pl.BlockSpec(memory_space=pltpu.MemorySpace.VMEM),
        cost_estimate=pl.CostEstimate(flops=flops, transcendentals=0,
                                      bytes_accessed=bytes_accessed),
    )(*inputs)
    # TODO(synk): at real backbone sizes, grid over the N*H*W (lane) axis with
    # dimension_semantics=("parallel",) and VMEM-sized tiles (v7x: 64 MiB).

    # (C1+C2, N, H, W) -> NCHW (tiny wrapper-side layout fixup).
    return out_flat.reshape(c1 + c2, n, ho1, wo1).transpose(1, 0, 2, 3)


# ----------------------------------------------------------------------------
# Reference (pure JAX) for a sanity check
# ----------------------------------------------------------------------------
def _reference(x, params):
    dn = ("NCHW", "OIHW", "NCHW")
    f1 = jax.lax.conv_general_dilated(x, params["w1"], (1, 1), ((1, 1), (1, 1)),
                                      dimension_numbers=dn)
    f1 = jnp.maximum(f1 + params["b1"][None, :, None, None], 0.0)
    f2 = jax.lax.conv_general_dilated(x, params["w2"], (2, 2), ((1, 1), (1, 1)),
                                      dimension_numbers=dn)
    f2 = jnp.maximum(f2 + params["b2"][None, :, None, None], 0.0)
    wh = jnp.asarray(_bilinear_matrix(f1.shape[2], f2.shape[2]), jnp.float32)
    ww = jnp.asarray(_bilinear_matrix(f1.shape[3], f2.shape[3]), jnp.float32)
    f2_up = jnp.einsum("Hh,nchw,Ww->ncHW", wh, f2, ww)
    return jnp.concatenate([f1, f2_up], axis=1)


if __name__ == "__main__":
    # Small deterministic setup: N=2, C_in=4, H=W=16, both backbones -> 8 channels
    key = jax.random.PRNGKey(0)
    kx, k1, k2, k3, k4 = jax.random.split(key, 5)
    x = jax.random.normal(kx, (2, 4, 16, 16), jnp.float32)
    params = {
        "w1": jax.random.normal(k1, (8, 4, 3, 3), jnp.float32) * 0.1,
        "b1": jax.random.normal(k2, (8,), jnp.float32) * 0.1,
        "w2": jax.random.normal(k3, (8, 4, 3, 3), jnp.float32) * 0.1,
        "b2": jax.random.normal(k4, (8,), jnp.float32) * 0.1,
    }

    out = feature_ensemble_2models(x, params)
    out = jax.block_until_ready(out)

    ref = jax.block_until_ready(_reference(x, params))
    assert out.shape == (2, 16, 16, 16), out.shape
    np.testing.assert_allclose(np.asarray(out), np.asarray(ref), rtol=1e-4, atol=1e-4)

    print("KERNEL_OK")
</pallas_src>

<mosaic_0001>
module attributes {stable_mosaic.version = 11 : i64} {
  func.func @kernel(%arg0: memref<40x512xf32, #tpu.memory_space<vmem>>, %arg1: memref<2x40x64xf32, #tpu.memory_space<vmem>>, %arg2: memref<8x40xf32, #tpu.memory_space<vmem>>, %arg3: memref<8x40xf32, #tpu.memory_space<vmem>>, %arg4: memref<64x256xf32, #tpu.memory_space<vmem>>, %arg5: memref<16x512xf32, #tpu.memory_space<vmem>>) attributes {dimension_semantics = [], scalar_prefetch = 0 : i64, scratch_operands = 0 : i64, tpu.core_type = #tpu.core_type<tc>} {
    %c0 = arith.constant 0 : index
    %c0_0 = arith.constant 0 : index
    %0 = vector.load %arg2[%c0, %c0_0] : memref<8x40xf32, #tpu.memory_space<vmem>>, vector<8x40xf32>
    %c0_1 = arith.constant 0 : index
    %c0_2 = arith.constant 0 : index
    %1 = vector.load %arg0[%c0_1, %c0_2] : memref<40x512xf32, #tpu.memory_space<vmem>>, vector<40x512xf32>
    %cst = arith.constant dense<0.000000e+00> : vector<8x512xf32>
    %2 = tpu.matmul %0, %1, %cst {dimension_numbers = #tpu.dot_dimension_numbers<[1], [0], [0], [1], [0, 0, 1, 1], [], []>} : vector<8x40xf32>, vector<40x512xf32>, vector<8x512xf32> -> vector<8x512xf32>
    %cst_3 = arith.constant 0.000000e+00 : f32
    %3 = vector.broadcast %cst_3 : f32 to vector<8x512xf32>
    %4 = arith.maximumf %2, %3 : vector<8x512xf32>
    %c0_4 = arith.constant 0 : index
    %c0_5 = arith.constant 0 : index
    %5 = vector.load %arg5[%c0_4, %c0_5] : memref<16x512xf32, #tpu.memory_space<vmem>>, vector<8x512xf32>
    tpu.vector_store %arg5[%c0_4, %c0_5], %4 {strides = array<i32>} : memref<16x512xf32, #tpu.memory_space<vmem>>, vector<8x512xf32>,
    %c0_6 = arith.constant 0 : index
    %c0_7 = arith.constant 0 : index
    %6 = vector.load %arg3[%c0_6, %c0_7] : memref<8x40xf32, #tpu.memory_space<vmem>>, vector<8x40xf32>
    %c0_8 = arith.constant 0 : index
    %c0_9 = arith.constant 0 : index
    %c0_10 = arith.constant 0 : index
    %7 = vector.load %arg1[%c0_8, %c0_9, %c0_10] : memref<2x40x64xf32, #tpu.memory_space<vmem>>, vector<1x40x64xf32>
    %8 = vector.shape_cast %7 : vector<1x40x64xf32> to vector<40x64xf32>
    %cst_11 = arith.constant dense<0.000000e+00> : vector<8x64xf32>
    %9 = tpu.matmul %6, %8, %cst_11 {dimension_numbers = #tpu.dot_dimension_numbers<[1], [0], [0], [1], [0, 0, 1, 1], [], []>} : vector<8x40xf32>, vector<40x64xf32>, vector<8x64xf32> -> vector<8x64xf32>
    %cst_12 = arith.constant 0.000000e+00 : f32
    %10 = vector.broadcast %cst_12 : f32 to vector<8x64xf32>
    %11 = arith.maximumf %9, %10 : vector<8x64xf32>
    %c0_13 = arith.constant 0 : index
    %c0_14 = arith.constant 0 : index
    %12 = vector.load %arg4[%c0_13, %c0_14] : memref<64x256xf32, #tpu.memory_space<vmem>>, vector<64x256xf32>
    %cst_15 = arith.constant dense<0.000000e+00> : vector<8x256xf32>
    %13 = tpu.matmul %11, %12, %cst_15 {dimension_numbers = #tpu.dot_dimension_numbers<[1], [0], [0], [1], [0, 0, 1, 1], [], []>} : vector<8x64xf32>, vector<64x256xf32>, vector<8x256xf32> -> vector<8x256xf32>
    %c8 = arith.constant 8 : index
    %c0_16 = arith.constant 0 : index
    %14 = vector.load %arg5[%c8, %c0_16] : memref<16x512xf32, #tpu.memory_space<vmem>>, vector<8x256xf32>
    tpu.vector_store %arg5[%c8, %c0_16], %13 {strides = array<i32>} : memref<16x512xf32, #tpu.memory_space<vmem>>, vector<8x256xf32>,
    %c0_17 = arith.constant 0 : index
    %c0_18 = arith.constant 0 : index
    %15 = vector.load %arg3[%c0_17, %c0_18] : memref<8x40xf32, #tpu.memory_space<vmem>>, vector<8x40xf32>
    %c1 = arith.constant 1 : index
    %c0_19 = arith.constant 0 : index
    %c0_20 = arith.constant 0 : index
    %16 = vector.load %arg1[%c1, %c0_19, %c0_20] : memref<2x40x64xf32, #tpu.memory_space<vmem>>, vector<1x40x64xf32>
    %17 = vector.shape_cast %16 : vector<1x40x64xf32> to vector<40x64xf32>
    %cst_21 = arith.constant dense<0.000000e+00> : vector<8x64xf32>
    %18 = tpu.matmul %15, %17, %cst_21 {dimension_numbers = #tpu.dot_dimension_numbers<[1], [0], [0], [1], [0, 0, 1, 1], [], []>} : vector<8x40xf32>, vector<40x64xf32>, vector<8x64xf32> -> vector<8x64xf32>
    %cst_22 = arith.constant 0.000000e+00 : f32
    %19 = vector.broadcast %cst_22 : f32 to vector<8x64xf32>
    %20 = arith.maximumf %18, %19 : vector<8x64xf32>
    %c0_23 = arith.constant 0 : index
    %c0_24 = arith.constant 0 : index
    %21 = vector.load %arg4[%c0_23, %c0_24] : memref<64x256xf32, #tpu.memory_space<vmem>>, vector<64x256xf32>
    %cst_25 = arith.constant dense<0.000000e+00> : vector<8x256xf32>
    %22 = tpu.matmul %20, %21, %cst_25 {dimension_numbers = #tpu.dot_dimension_numbers<[1], [0], [0], [1], [0, 0, 1, 1], [], []>} : vector<8x64xf32>, vector<64x256xf32>, vector<8x256xf32> -> vector<8x256xf32>
    %c8_26 = arith.constant 8 : index
    %c256 = arith.constant 256 : index
    %23 = vector.load %arg5[%c8_26, %c256] : memref<16x512xf32, #tpu.memory_space<vmem>>, vector<8x256xf32>
    tpu.vector_store %arg5[%c8_26, %c256], %22 {strides = array<i32>} : memref<16x512xf32, #tpu.memory_space<vmem>>, vector<8x256xf32>,
    return
  }
}

</mosaic_0001>

<llo_original>
// kernel: feature_ensemble_2models.1
$region0: #{feature_ensemble_2models.1}
  #allocation0 [shape = 'u32[]', space=smem, size = 0x4, offset = 0x4, fixed_abs, tag = 'smem constant byte address 0x4 - core index']
  #allocation1 [shape = 'u32[72,128]{1,0:T(1,128)}', space=vmem, size = 0x9000, scoped, tag = 'internal scratch']
  %s0 = inlined_call_operand.vmem [shape: f32[40,512], index: 0, kind: input, shape index: {}]
  %s1 = inlined_call_operand.vmem [shape: f32[2,40,64], index: 1, kind: input, shape index: {}]
  %s2 = inlined_call_operand.vmem [shape: f32[8,40], index: 2, kind: input, shape index: {}]
  %s3 = inlined_call_operand.vmem [shape: f32[8,40], index: 3, kind: input, shape index: {}]
  %s4 = inlined_call_operand.vmem [shape: f32[64,256], index: 4, kind: input, shape index: {}]
  %s5 = inlined_call_operand.vmem [shape: f32[16,512], index: 5, kind: output, shape index: {}]
  %s6 = sld [smem:[#allocation0]]
  $region30: #{feature_ensemble_2models.1} parent=0
    _
  %s8 = ssub.s32 1, %s6
  %s9 = scalar_select 0, %s8, %s6
  // Predicated region
  $region2: #{feature_ensemble_2models.1} parent=0 // pred_check
    _
  $region3: #{feature_ensemble_2models.1} parent=0 // pred_check_branch
    %11 = sbr.rel (0) target = $region5
  $region4: #{feature_ensemble_2models.1} parent=0 // pred_region
    _
  $region5: #{feature_ensemble_2models.1} parent=0 // pred_fallthru
    _
  // Predicated region
  $region6: #{feature_ensemble_2models.1} parent=0 // pred_check
    _
  $region7: #{feature_ensemble_2models.1} parent=0 // pred_check_branch
    %13 = sbr.rel (0) target = $region9
  $region8: #{feature_ensemble_2models.1} parent=0 // pred_region
    _
  $region9: #{feature_ensemble_2models.1} parent=0 // pred_fallthru
    _
  // Predicated region
  $region10: #{feature_ensemble_2models.1} parent=0 // pred_check
    _
  $region11: #{feature_ensemble_2models.1} parent=0 // pred_check_branch
    %15 = sbr.rel (0) target = $region13
  $region12: #{feature_ensemble_2models.1} parent=0 // pred_region
    _
  $region13: #{feature_ensemble_2models.1} parent=0 // pred_fallthru
    _
  // Predicated region
  $region14: #{feature_ensemble_2models.1} parent=0 // pred_check
    _
  $region15: #{feature_ensemble_2models.1} parent=0 // pred_check_branch
    %17 = sbr.rel (0) target = $region17
  $region16: #{feature_ensemble_2models.1} parent=0 // pred_region
    _
  $region17: #{feature_ensemble_2models.1} parent=0 // pred_fallthru
    _
  // Predicated region
  $region18: #{feature_ensemble_2models.1} parent=0 // pred_check
    _
  $region19: #{feature_ensemble_2models.1} parent=0 // pred_check_branch
    %19 = sbr.rel (0) target = $region21
  $region20: #{feature_ensemble_2models.1} parent=0 // pred_region
    _
  $region21: #{feature_ensemble_2models.1} parent=0 // pred_fallthru
    _
  %v20 = vld [vmem:[%s2] sm:$0xff]
  %v21 = vld [vmem:[%s0] sm:$0xff]
  %v22 = vld [vmem:[%s0 + $0x8] sm:$0xff]
  %v23 = vld [vmem:[%s0 + $0x10] sm:$0xff]
  %v24 = vld [vmem:[%s0 + $0x18] sm:$0xff]
  %v25 = vld [vmem:[%s0 + $0x20] sm:$0xff]
  %v26 = vld [vmem:[%s0 + $0x28] sm:$0xff]
  %v27 = vld [vmem:[%s0 + $0x30] sm:$0xff]
  %v28 = vld [vmem:[%s0 + $0x38] sm:$0xff]
  %v29 = vld [vmem:[%s0 + $0x40] sm:$0xff]
  %v30 = vld [vmem:[%s0 + $0x48] sm:$0xff]
  %v31 = vld [vmem:[%s0 + $0x50] sm:$0xff]
  %v32 = vld [vmem:[%s0 + $0x58] sm:$0xff]
  %v33 = vld [vmem:[%s0 + $0x60] sm:$0xff]
  %v34 = vld [vmem:[%s0 + $0x68] sm:$0xff]
  %v35 = vld [vmem:[%s0 + $0x70] sm:$0xff]
  %v36 = vld [vmem:[%s0 + $0x78] sm:$0xff]
  %v37 = vld [vmem:[%s0 + $0x80] sm:$0xff]
  %v38 = vld [vmem:[%s0 + $0x88] sm:$0xff]
  %v39 = vld [vmem:[%s0 + $0x90] sm:$0xff]
  %v40 = vld [vmem:[%s0 + $0x98] sm:$0xff]
  %vm41 = vcmask 326656
  %v43 = vsel %vm41, %v20, 0
  %45 = vmatpush.msra.mxu0 0.0
  %46 = vmatpush.msra.mxu0 0.0
  %47 = vmatpush.msra.mxu0 0.0
  %48 = vmatpush.msra.mxu0 0.0
  %49 = vmatpush.msra.mxu0 0.0
  %50 = vmatpush.msra.mxu0 0.0
  %51 = vmatpush.msra.mxu0 0.0
  %52 = vmatpush.msra.mxu0 0.0
  %53 = vmatpush.msra.mxu0 0.0
  %54 = vmatpush.msra.mxu0 0.0
  %55 = vmatpush.msra.mxu0 0.0
  %56 = vmatpush.msra.mxu0 %v37
  %57 = vmatpush.msra.mxu0 %v33
  %58 = vmatpush.msra.mxu0 %v29
  %59 = vmatpush.msra.mxu0 %v25
  %60 = vmatpush.msra.mxu0 %v21
  %61 = vmatmul.f32.gmra.mxu0 %v43
  %v62 = vpop.f32.mrf.mxu0
  %v63 = vadd.f32 0.0, %v62
  %64 = vdwg.mxu0
  %65 = vmatpush.msra.mxu0 0.0
  %66 = vmatpush.msra.mxu0 0.0
  %67 = vmatpush.msra.mxu0 0.0
  %68 = vmatpush.msra.mxu0 0.0
  %69 = vmatpush.msra.mxu0 0.0
  %70 = vmatpush.msra.mxu0 0.0
  %71 = vmatpush.msra.mxu0 0.0
  %72 = vmatpush.msra.mxu0 0.0
  %73 = vmatpush.msra.mxu0 0.0
  %74 = vmatpush.msra.mxu0 0.0
  %75 = vmatpush.msra.mxu0 0.0
  %76 = vmatpush.msra.mxu0 %v38
  %77 = vmatpush.msra.mxu0 %v34
  %78 = vmatpush.msra.mxu0 %v30
  %79 = vmatpush.msra.mxu0 %v26
  %80 = vmatpush.msra.mxu0 %v22
  %81 = vmatmul.f32.gmra.mxu0 %v43
  %v82 = vpop.f32.mrf.mxu0
  %v83 = vadd.f32 0.0, %v82
  %84 = vdwg.mxu0
  %85 = vmatpush.msra.mxu0 0.0
  %86 = vmatpush.msra.mxu0 0.0
  %87 = vmatpush.msra.mxu0 0.0
  %88 = vmatpush.msra.mxu0 0.0
  %89 = vmatpush.msra.mxu0 0.0
  %90 = vmatpush.msra.mxu0 0.0
  %91 = vmatpush.msra.mxu0 0.0
  %92 = vmatpush.msra.mxu0 0.0
  %93 = vmatpush.msra.mxu0 0.0
  %94 = vmatpush.msra.mxu0 0.0
  %95 = vmatpush.msra.mxu0 0.0
  %96 = vmatpush.msra.mxu0 %v39
  %97 = vmatpush.msra.mxu0 %v35
  %98 = vmatpush.msra.mxu0 %v31
  %99 = vmatpush.msra.mxu0 %v27
  %100 = vmatpush.msra.mxu0 %v23
  %101 = vmatmul.f32.gmra.mxu0 %v43
  %v102 = vpop.f32.mrf.mxu0
  %v103 = vadd.f32 0.0, %v102
  %104 = vdwg.mxu0
  %105 = vmatpush.msra.mxu0 0.0
  %106 = vmatpush.msra.mxu0 0.0
  %107 = vmatpush.msra.mxu0 0.0
  %108 = vmatpush.msra.mxu0 0.0
  %109 = vmatpush.msra.mxu0 0.0
  %110 = vmatpush.msra.mxu0 0.0
  %111 = vmatpush.msra.mxu0 0.0
  %112 = vmatpush.msra.mxu0 0.0
  %113 = vmatpush.msra.mxu0 0.0
  %114 = vmatpush.msra.mxu0 0.0
  %115 = vmatpush.msra.mxu0 0.0
  %116 = vmatpush.msra.mxu0 %v40
  %117 = vmatpush.msra.mxu0 %v36
  %118 = vmatpush.msra.mxu0 %v32
  %119 = vmatpush.msra.mxu0 %v28
  %120 = vmatpush.msra.mxu0 %v24
  %121 = vmatmul.f32.gmra.mxu0 %v43
  %v122 = vpop.f32.mrf.mxu0
  %v123 = vadd.f32 0.0, %v122
  %124 = vdwg.mxu0
  %v125 = vmax.f32 %v63, 0.0
  %v126 = vmax.f32 %v83, 0.0
  %v127 = vmax.f32 %v103, 0.0
  %v128 = vmax.f32 %v123, 0.0
  %129 = vst [vmem:[%s5] sm:$0xff] %v125
  %130 = vst [vmem:[%s5 + $0x8] sm:$0xff] %v126
  %131 = vst [vmem:[%s5 + $0x10] sm:$0xff] %v127
  %132 = vst [vmem:[%s5 + $0x18] sm:$0xff] %v128
  %v133 = vld [vmem:[%s3] sm:$0xff]
  %v134 = vld [vmem:[%s1] sm:$0xff]
  %v135 = vld [vmem:[%s1 + $0x8] sm:$0xff]
  %v136 = vld [vmem:[%s1 + $0x10] sm:$0xff]
  %v137 = vld [vmem:[%s1 + $0x18] sm:$0xff]
  %v138 = vld [vmem:[%s1 + $0x20] sm:$0xff]
  %v140 = vsel %vm41, %v133, 0
  %142 = vmatpush.msra.mxu0 0.0
  %143 = vmatpush.msra.mxu0 0.0
  %144 = vmatpush.msra.mxu0 0.0
  %145 = vmatpush.msra.mxu0 0.0
  %146 = vmatpush.msra.mxu0 0.0
  %147 = vmatpush.msra.mxu0 0.0
  %148 = vmatpush.msra.mxu0 0.0
  %149 = vmatpush.msra.mxu0 0.0
  %150 = vmatpush.msra.mxu0 0.0
  %151 = vmatpush.msra.mxu0 0.0
  %152 = vmatpush.msra.mxu0 0.0
  %153 = vmatpush.msra.mxu0 %v138
  %154 = vmatpush.msra.mxu0 %v137
  %155 = vmatpush.msra.mxu0 %v136
  %156 = vmatpush.msra.mxu0 %v135
  %157 = vmatpush.msra.mxu0 %v134
  %158 = vmatmul.f32.gmra.mxu0 %v140
  %v159 = vpop.f32.mrf.mxu0
  %v160 = vadd.f32 0.0, %v159
  %161 = vdwg.mxu0
  %v162 = vmax.f32 %v160, 0.0
  %v163 = vld [vmem:[%s4] sm:$0xff]
  %v164 = vld [vmem:[%s4 + $0x8] sm:$0xff]
  %v165 = vld [vmem:[%s4 + $0x10] sm:$0xff]
  %v166 = vld [vmem:[%s4 + $0x18] sm:$0xff]
  %v167 = vld [vmem:[%s4 + $0x20] sm:$0xff]
  %v168 = vld [vmem:[%s4 + $0x28] sm:$0xff]
  %v169 = vld [vmem:[%s4 + $0x30] sm:$0xff]
  %v170 = vld [vmem:[%s4 + $0x38] sm:$0xff]
  %v171 = vld [vmem:[%s4 + $0x40] sm:$0xff]
  %v172 = vld [vmem:[%s4 + $0x48] sm:$0xff]
  %v173 = vld [vmem:[%s4 + $0x50] sm:$0xff]
  %v174 = vld [vmem:[%s4 + $0x58] sm:$0xff]
  %v175 = vld [vmem:[%s4 + $0x60] sm:$0xff]
  %v176 = vld [vmem:[%s4 + $0x68] sm:$0xff]
  %v177 = vld [vmem:[%s4 + $0x70] sm:$0xff]
  %v178 = vld [vmem:[%s4 + $0x78] sm:$0xff]
  %vm179 = vcmask 523264
  %v181 = vsel %vm179, %v162, 0
  %183 = vmatpush.msra.mxu0 0.0
  %184 = vmatpush.msra.mxu0 0.0
  %185 = vmatpush.msra.mxu0 0.0
  %186 = vmatpush.msra.mxu0 0.0
  %187 = vmatpush.msra.mxu0 0.0
  %188 = vmatpush.msra.mxu0 0.0
  %189 = vmatpush.msra.mxu0 0.0
  %190 = vmatpush.msra.mxu0 0.0
  %191 = vmatpush.msra.mxu0 %v177
  %192 = vmatpush.msra.mxu0 %v175
  %193 = vmatpush.msra.mxu0 %v173
  %194 = vmatpush.msra.mxu0 %v171
  %195 = vmatpush.msra.mxu0 %v169
  %196 = vmatpush.msra.mxu0 %v167
  %197 = vmatpush.msra.mxu0 %v165
  %198 = vmatpush.msra.mxu0 %v163
  %199 = vmatmul.f32.gmra.mxu0 %v181
  %v200 = vpop.f32.mrf.mxu0
  %v201 = vadd.f32 0.0, %v200
  %202 = vdwg.mxu0
  %203 = vmatpush.msra.mxu0 0.0
  %204 = vmatpush.msra.mxu0 0.0
  %205 = vmatpush.msra.mxu0 0.0
  %206 = vmatpush.msra.mxu0 0.0
  %207 = vmatpush.msra.mxu0 0.0
  %208 = vmatpush.msra.mxu0 0.0
  %209 = vmatpush.msra.mxu0 0.0
  %210 = vmatpush.msra.mxu0 0.0
  %211 = vmatpush.msra.mxu0 %v178
  %212 = vmatpush.msra.mxu0 %v176
  %213 = vmatpush.msra.mxu0 %v174
  %214 = vmatpush.msra.mxu0 %v172
  %215 = vmatpush.msra.mxu0 %v170
  %216 = vmatpush.msra.mxu0 %v168
  %217 = vmatpush.msra.mxu0 %v166
  %218 = vmatpush.msra.mxu0 %v164
  %219 = vmatmul.f32.gmra.mxu0 %v181
  %v220 = vpop.f32.mrf.mxu0
  %v221 = vadd.f32 0.0, %v220
  %222 = vdwg.mxu0
  %223 = vst [vmem:[%s5 + $0x20] sm:$0xff] %v201
  %224 = vst [vmem:[%s5 + $0x28] sm:$0xff] %v221
  %v225 = vld [vmem:[%s3] sm:$0xff]
  %s226 = scalar_lea.vmem %s1, 40
  %v227 = vld [vmem:[%s226] sm:$0xff]
  %v228 = vld [vmem:[%s226 + $0x8] sm:$0xff]
  %v229 = vld [vmem:[%s226 + $0x10] sm:$0xff]
  %v230 = vld [vmem:[%s226 + $0x18] sm:$0xff]
  %v231 = vld [vmem:[%s226 + $0x20] sm:$0xff]
  %v233 = vsel %vm41, %v225, 0
  %235 = vmatpush.msra.mxu0 0.0
  %236 = vmatpush.msra.mxu0 0.0
  %237 = vmatpush.msra.mxu0 0.0
  %238 = vmatpush.msra.mxu0 0.0
  %239 = vmatpush.msra.mxu0 0.0
  %240 = vmatpush.msra.mxu0 0.0
  %241 = vmatpush.msra.mxu0 0.0
  %242 = vmatpush.msra.mxu0 0.0
  %243 = vmatpush.msra.mxu0 0.0
  %244 = vmatpush.msra.mxu0 0.0
  %245 = vmatpush.msra.mxu0 0.0
  %246 = vmatpush.msra.mxu0 %v231
  %247 = vmatpush.msra.mxu0 %v230
  %248 = vmatpush.msra.mxu0 %v229
  %249 = vmatpush.msra.mxu0 %v228
  %250 = vmatpush.msra.mxu0 %v227
  %251 = vmatmul.f32.gmra.mxu0 %v233
  %v252 = vpop.f32.mrf.mxu0
  %v253 = vadd.f32 0.0, %v252
  %254 = vdwg.mxu0
  %v255 = vmax.f32 %v253, 0.0
  %v256 = vld [vmem:[%s4] sm:$0xff]
  %v257 = vld [vmem:[%s4 + $0x8] sm:$0xff]
  %v258 = vld [vmem:[%s4 + $0x10] sm:$0xff]
  %v259 = vld [vmem:[%s4 + $0x18] sm:$0xff]
  %v260 = vld [vmem:[%s4 + $0x20] sm:$0xff]
  %v261 = vld [vmem:[%s4 + $0x28] sm:$0xff]
  %v262 = vld [vmem:[%s4 + $0x30] sm:$0xff]
  %v263 = vld [vmem:[%s4 + $0x38] sm:$0xff]
  %v264 = vld [vmem:[%s4 + $0x40] sm:$0xff]
  %v265 = vld [vmem:[%s4 + $0x48] sm:$0xff]
  %v266 = vld [vmem:[%s4 + $0x50] sm:$0xff]
  %v267 = vld [vmem:[%s4 + $0x58] sm:$0xff]
  %v268 = vld [vmem:[%s4 + $0x60] sm:$0xff]
  %v269 = vld [vmem:[%s4 + $0x68] sm:$0xff]
  %v270 = vld [vmem:[%s4 + $0x70] sm:$0xff]
  %v271 = vld [vmem:[%s4 + $0x78] sm:$0xff]
  %v273 = vsel %vm179, %v255, 0
  %275 = vmatpush.msra.mxu0 0.0
  %276 = vmatpush.msra.mxu0 0.0
  %277 = vmatpush.msra.mxu0 0.0
  %278 = vmatpush.msra.mxu0 0.0
  %279 = vmatpush.msra.mxu0 0.0
  %280 = vmatpush.msra.mxu0 0.0
  %281 = vmatpush.msra.mxu0 0.0
  %282 = vmatpush.msra.mxu0 0.0
  %283 = vmatpush.msra.mxu0 %v270
  %284 = vmatpush.msra.mxu0 %v268
  %285 = vmatpush.msra.mxu0 %v266
  %286 = vmatpush.msra.mxu0 %v264
  %287 = vmatpush.msra.mxu0 %v262
  %288 = vmatpush.msra.mxu0 %v260
  %289 = vmatpush.msra.mxu0 %v258
  %290 = vmatpush.msra.mxu0 %v256
  %291 = vmatmul.f32.gmra.mxu0 %v273
  %v292 = vpop.f32.mrf.mxu0
  %v293 = vadd.f32 0.0, %v292
  %294 = vdwg.mxu0
  %295 = vmatpush.msra.mxu0 0.0
  %296 = vmatpush.msra.mxu0 0.0
  %297 = vmatpush.msra.mxu0 0.0
  %298 = vmatpush.msra.mxu0 0.0
  %299 = vmatpush.msra.mxu0 0.0
  %300 = vmatpush.msra.mxu0 0.0
  %301 = vmatpush.msra.mxu0 0.0
  %302 = vmatpush.msra.mxu0 0.0
  %303 = vmatpush.msra.mxu0 %v271
  %304 = vmatpush.msra.mxu0 %v269
  %305 = vmatpush.msra.mxu0 %v267
  %306 = vmatpush.msra.mxu0 %v265
  %307 = vmatpush.msra.mxu0 %v263
  %308 = vmatpush.msra.mxu0 %v261
  %309 = vmatpush.msra.mxu0 %v259
  %310 = vmatpush.msra.mxu0 %v257
  %311 = vmatmul.f32.gmra.mxu0 %v273
  %v312 = vpop.f32.mrf.mxu0
  %v313 = vadd.f32 0.0, %v312
  %314 = vdwg.mxu0
  %315 = vst [vmem:[%s5 + $0x30] sm:$0xff] %v293
  %316 = vst [vmem:[%s5 + $0x38] sm:$0xff] %v313
  // Predicated region
  $region22: #{feature_ensemble_2models.1} parent=0 // pred_check
    _
  $region23: #{feature_ensemble_2models.1} parent=0 // pred_check_branch
    %318 = sbr.rel (0) target = $region25
  $region24: #{feature_ensemble_2models.1} parent=0 // pred_region
    _
  $region25: #{feature_ensemble_2models.1} parent=0 // pred_fallthru
    _
  // Predicated region
  $region26: #{feature_ensemble_2models.1} parent=0 // pred_check
    _
  $region27: #{feature_ensemble_2models.1} parent=0 // pred_check_branch
    %320 = sbr.rel (0) target = $region29
  $region28: #{feature_ensemble_2models.1} parent=0 // pred_region
    _
  $region29: #{feature_ensemble_2models.1} parent=0 // pred_fallthru
    _

</llo_original>
